<compile_context>
chip_gen: v6e
topology: v6e:2x2x1
jax: 0.10.0
libtpu: 0.0.40
codegen_flags: <defaults>
</compile_context>

<pallas_src>
import functools

import jax
import jax.numpy as jnp
from jax import lax
from jax.experimental import pallas as pl
from jax.experimental.pallas import tpu as pltpu


# ---------------------------------------------------------------------------
# Hardware-aware tile / VMEM-budget helpers
# ---------------------------------------------------------------------------
@functools.lru_cache(maxsize=None)
def _tpu_info():
    """(per-core VMEM capacity in bytes, prefer 256-wide Cout tiles)."""
    try:
        cap = int(pltpu.get_tpu_info().vmem_capacity_bytes)
    except Exception:
        cap = 64 << 20                       # conservative default (v7x per-core)
    try:
        kind = jax.devices()[0].device_kind.lower()
    except Exception:
        kind = ""
    older = any(t in kind for t in ("v2", "v3", "v4", "v5"))
    return cap, (not older)                  # v6e / v7x MXU is 256 wide


def _vmem_limit():
    cap, _ = _tpu_info()
    # ~48 MiB on a 64 MiB/core part (v7x), ~96 MiB on 128 MiB parts (v5e/v6e).
    return int(min(cap * 3 // 4, 100 << 20))


def _tile_candidates(n, mult, max_tile):
    """Divisors of n that are multiples of `mult` and <= max_tile, descending.
    Falls back to [n] (full extent) so the (8,128) block rule always holds."""
    hi = max(1, min(n, max_tile))
    cands = [t for t in range(mult * (hi // mult), 0, -mult) if n % t == 0]
    return cands or [n]


def _pick_mm_tiles(M, Cin, Cout, dtype, has_res):
    """Tiles for the 1x1-conv matmul: tm rows of the flattened spatial dim and
    tn output channels, budgeted on the dominant VMEM consumers."""
    cap, prefer256 = _tpu_info()
    item = jnp.dtype(dtype).itemsize
    budget = int(cap * 0.45)
    tn_mult = 256 if (prefer256 and Cout % 256 == 0) else 128
    tn_cands = _tile_candidates(Cout, tn_mult, 2048)
    tm_cands = _tile_candidates(M, 8, 2048)

    def fits(tm, tn):
        blocks = 2 * (tm * Cin * item                      # x block (double-buffered)
                      + Cin * tn * item                    # weight slice
                      + 2 * tn * 4                         # scale / shift (f32)
                      + tm * tn * item * (2 if has_res else 1))  # out (+res)
        temps = 2 * tm * tn * 4 + tm * Cin * 4             # f32 acc / epilogue temps
        return blocks + temps + (2 << 20) <= budget

    for tn in tn_cands:
        for tm in tm_cands:
            if fits(tm, tn):
                return tm, tn
    return tm_cands[-1], tn_cands[-1]


def _pick_conv_tiles(Ho, Wo, Wp, Cin, Cout, khw, dil, dtype):
    """Tiles for the 3x3 conv: th output rows and tn output channels."""
    cap, prefer256 = _tpu_info()
    item = jnp.dtype(dtype).itemsize
    budget = int(cap * 0.45)
    KH, KW = khw
    halo = (KH - 1) * dil
    tn_mult = 256 if (prefer256 and Cout % 256 == 0) else 128
    tn_cands = _tile_candidates(Cout, tn_mult, 1024)
    th_cands = _tile_candidates(Ho, 1, 256)

    def fits(th, tn):
        slab = (th + halo) * Wp * Cin * item               # halo'd input slab (scratch)
        acc = th * Wo * tn * 4                             # f32 accumulator scratch
        blocks = 2 * (KH * KW * Cin * tn * item            # weight slice (double-buffered)
                      + 2 * tn * 4                         # scale / shift
                      + th * Wo * tn * item)               # output block
        temps = 2 * (th + halo) * Wo * Cin * item + 2 * th * Wo * tn * 4
        return slab + acc + blocks + temps + (2 << 20) <= budget

    for tn in tn_cands:
        for th in th_cands:
            if fits(th, tn):
                return th, tn
    return th_cands[-1], tn_cands[-1]


# ---------------------------------------------------------------------------
# Kernels
# ---------------------------------------------------------------------------
def _make_mm_bn_kernel(relu, has_residual):
    """relu?( x @ w * scale + shift (+ residual) ) for one (tm, tn) tile."""
    def kernel(*refs):
        if has_residual:
            x_ref, w_ref, scale_ref, shift_ref, res_ref, o_ref = refs
        else:
            x_ref, w_ref, scale_ref, shift_ref, o_ref = refs
        acc = jnp.dot(x_ref[0], w_ref[...], preferred_element_type=jnp.float32)
        out = acc * scale_ref[...] + shift_ref[...]
        if has_residual:
            out = out + res_ref[0].astype(jnp.float32)
        if relu:
            out = jnp.maximum(out, 0.0)
        o_ref[0] = out.astype(o_ref.dtype)
    return kernel


def _make_conv3x3_kernel(KH, KW, dil, th, Wo, relu):
    """Fused KHxKW (dilated) conv + folded BN (+ ReLU) on one (th, Wo, tn) tile.

    The halo'd input row slab lives in a VMEM scratch, fetched by a manual DMA
    only when the Cout-tile index j == 0 and reused across all Cout tiles."""
    def kernel(x_hbm, w_ref, scale_ref, shift_ref, o_ref, slab_ref, acc_ref, sem):
        n = pl.program_id(0)
        h = pl.program_id(1)
        j = pl.program_id(2)
        hin = th + (KH - 1) * dil

        @pl.when(j == 0)
        def _():
            cp = pltpu.make_async_copy(
                x_hbm.at[n, pl.ds(h * th, hin)], slab_ref, sem.at[0])
            cp.start()
            cp.wait()

        first = True
        for kw in range(KW):
            # One W-slice per kw (3 total) instead of one per tap (9 total);
            # the per-kh selection is an H (major-dim) slice, which is cheap.
            xw = slab_ref[:, kw * dil:kw * dil + Wo, :]
            for kh in range(KH):
                patch = xw[kh * dil:kh * dil + th]
                contrib = jnp.dot(patch.reshape(th * Wo, patch.shape[-1]),
                                  w_ref[kh, kw],
                                  preferred_element_type=jnp.float32)
                if first:
                    acc_ref[...] = contrib
                    first = False
                else:
                    acc_ref[...] += contrib          # MRB-friendly accumulation

        out = acc_ref[...] * scale_ref[...] + shift_ref[...]
        if relu:
            out = jnp.maximum(out, 0.0)
        o_ref[0] = out.reshape(th, Wo, -1).astype(o_ref.dtype)
    return kernel


# ---------------------------------------------------------------------------
# Fused conv + folded-BN wrappers
# ---------------------------------------------------------------------------
def conv1x1_bn_act(x, w, scale, shift, *, relu, residual=None):
    """x: (N,H,W,Cin) NHWC; w: (Cin,Cout); scale/shift: (1,Cout) f32.
    Computes relu?( x @ w * scale + shift + residual? ), stride 1."""
    N, H, W, Cin = x.shape
    Cout = w.shape[1]
    M = H * W
    xf = x.reshape(N, M, Cin)                         # free reshape (NHWC, C minor)
    has_res = residual is not None
    resf = residual.reshape(N, M, Cout) if has_res else None
    tm, tn = _pick_mm_tiles(M, Cin, Cout, x.dtype, has_res)

    in_specs = [
        pl.BlockSpec((1, tm, Cin), lambda n, m, j: (n, m, 0)),
        pl.BlockSpec((Cin, tn), lambda n, m, j: (0, j)),
        pl.BlockSpec((1, tn), lambda n, m, j: (0, j)),
        pl.BlockSpec((1, tn), lambda n, m, j: (0, j)),
    ]
    inputs = [xf, w, scale, shift]
    if has_res:
        in_specs.append(pl.BlockSpec((1, tm, tn), lambda n, m, j: (n, m, j)))
        inputs.append(resf)

    out = pl.pallas_call(
        _make_mm_bn_kernel(relu, has_res),
        out_shape=jax.ShapeDtypeStruct((N, M, Cout), x.dtype),
        grid=(N, M // tm, Cout // tn),
        in_specs=in_specs,
        out_specs=pl.BlockSpec((1, tm, tn), lambda n, m, j: (n, m, j)),
        compiler_params=pltpu.CompilerParams(
            dimension_semantics=("parallel", "parallel", "arbitrary"),
            vmem_limit_bytes=_vmem_limit()),
    )(*inputs)
    return out.reshape(N, H, W, Cout)


def conv3x3_bn_act(x, w, scale, shift, *, dilation, relu):
    """x: (N,H,W,Cin) NHWC; w: (3,3,Cin,Cout); stride 1, padding=dilation."""
    KH, KW, wcin, Cout = w.shape
    d = dilation
    N, Ho, Wo, Cin = x.shape
    assert wcin == Cin
    # TODO(synk): the zero-pad is still one XLA HBM pass over the (smallest)
    #             activation; folding it into the halo DMA needs edge-row masking.
    xp = jnp.pad(x, ((0, 0), (d, d), (d, d), (0, 0)))
    Wp = Wo + 2 * d
    th, tn = _pick_conv_tiles(Ho, Wo, Wp, Cin, Cout, (KH, KW), d, x.dtype)
    hin = th + (KH - 1) * d

    return pl.pallas_call(
        _make_conv3x3_kernel(KH, KW, d, th, Wo, relu),
        out_shape=jax.ShapeDtypeStruct((N, Ho, Wo, Cout), x.dtype),
        grid=(N, Ho // th, Cout // tn),
        in_specs=[
            pl.BlockSpec(memory_space=pl.ANY),        # padded input: manual halo DMA
            pl.BlockSpec((KH, KW, Cin, tn), lambda n, h, j: (0, 0, 0, j)),
            pl.BlockSpec((1, tn), lambda n, h, j: (0, j)),
            pl.BlockSpec((1, tn), lambda n, h, j: (0, j)),
        ],
        out_specs=pl.BlockSpec((1, th, Wo, tn), lambda n, h, j: (n, h, 0, j)),
        scratch_shapes=[
            pltpu.VMEM((hin, Wp, Cin), x.dtype),      # halo'd input row slab
            pltpu.VMEM((th * Wo, tn), jnp.float32),   # f32 accumulator
            pltpu.SemaphoreType.DMA((1,)),
        ],
        compiler_params=pltpu.CompilerParams(
            dimension_semantics=("parallel", "parallel", "arbitrary"),
            vmem_limit_bytes=_vmem_limit()),
    )(xp, w, scale, shift)


# ---------------------------------------------------------------------------
# Parameters (deterministic init; frozen BN folded into per-channel scale/shift)
# ---------------------------------------------------------------------------
def init_bottleneck_params(key, *, inplanes, planes, downsample=False,
                           dtype=jnp.float32, eps=1e-5):
    expansion = 4
    keys = jax.random.split(key, 8)

    def conv1x1_w(k, cin, cout):
        return (0.01 * jax.random.normal(k, (cin, cout))).astype(dtype)

    def conv3x3_w(k, cin, cout):
        return (0.01 * jax.random.normal(k, (3, 3, cin, cout))).astype(dtype)

    def bn_fold(k, c):
        kg, kb, km, kv = jax.random.split(k, 4)
        gamma = 1.0 + 0.1 * jax.random.normal(kg, (c,))
        beta = 0.1 * jax.random.normal(kb, (c,))
        mean = 0.1 * jax.random.normal(km, (c,))
        var = jax.random.uniform(kv, (c,), minval=0.5, maxval=1.5)
        scale = gamma * lax.rsqrt(var + eps)
        shift = beta - mean * scale
        return (scale.reshape(1, c).astype(jnp.float32),
                shift.reshape(1, c).astype(jnp.float32))

    p = {
        "w1": conv1x1_w(keys[0], inplanes, planes),
        "w2": conv3x3_w(keys[1], planes, planes),
        "w3": conv1x1_w(keys[2], planes, planes * expansion),
    }
    p["s1"], p["b1"] = bn_fold(keys[3], planes)
    p["s2"], p["b2"] = bn_fold(keys[4], planes)
    p["s3"], p["b3"] = bn_fold(keys[5], planes * expansion)
    if downsample:
        p["w_ds"] = conv1x1_w(keys[6], inplanes, planes * expansion)
        p["s_ds"], p["b_ds"] = bn_fold(keys[7], planes * expansion)
    return p


# ---------------------------------------------------------------------------
# Forward pass (mirrors Bottleneck.forward)
# ---------------------------------------------------------------------------
def _round_up(n, m):
    return -(-n // m) * m


def _pad_to(a, axis, size):
    pad = size - a.shape[axis]
    if pad == 0:
        return a
    widths = [(0, 0)] * a.ndim
    widths[axis] = (0, pad)
    return jnp.pad(a, widths)


def bottleneck_forward_nhwc(params, x, *, stride=1, dilation=1):
    """NHWC in -> NHWC out. Keep activations NHWC across stacked blocks; only
    the NCHW wrapper below transposes, once, to match the module interface."""
    planes = params["w1"].shape[1]
    cout = params["w3"].shape[1]                       # planes * expansion
    # Lane-dense channel padding: zero channels propagate exactly through
    # conv (zero weights), folded BN (zero scale/shift) and ReLU.
    cp = _round_up(planes, 128)
    ep = _round_up(cout, 128)

    # TODO(synk): stride is applied as a wrapper-level subsample (exact for the
    #             1x1 convs); folding it into conv1's BlockSpec would save one
    #             XLA pass for strided blocks.
    xs = x[:, ::stride, ::stride, :] if stride > 1 else x

    # conv1 (1x1) + bn1 + relu
    out = conv1x1_bn_act(
        xs, _pad_to(params["w1"], 1, cp),
        _pad_to(params["s1"], 1, cp), _pad_to(params["b1"], 1, cp), relu=True)

    # conv2 (3x3, dilated) + bn2 + relu
    w2 = _pad_to(_pad_to(params["w2"], 2, cp), 3, cp)
    out = conv3x3_bn_act(
        out, w2, _pad_to(params["s2"], 1, cp), _pad_to(params["b2"], 1, cp),
        dilation=dilation, relu=True)

    # residual branch
    if "w_ds" in params:
        residual = conv1x1_bn_act(
            xs, _pad_to(params["w_ds"], 1, ep),
            _pad_to(params["s_ds"], 1, ep), _pad_to(params["b_ds"], 1, ep),
            relu=False)
    else:
        assert stride == 1 and x.shape[-1] == cout, (
            "identity residual requires stride==1 and inplanes == planes*4")
        residual = _pad_to(x, 3, ep)       # no-op for real shapes (cout % 128 == 0)

    # conv3 (1x1) + bn3 + residual add + relu, fused in one kernel epilogue
    w3 = _pad_to(_pad_to(params["w3"], 0, cp), 1, ep)
    out = conv1x1_bn_act(
        out, w3, _pad_to(params["s3"], 1, ep), _pad_to(params["b3"], 1, ep),
        relu=True, residual=residual)
    return out[..., :cout] if ep != cout else out


def bottleneck_forward(params, x_nchw, *, stride=1, dilation=1):
    x = jnp.transpose(x_nchw, (0, 2, 3, 1))            # NCHW -> NHWC (once)
    y = bottleneck_forward_nhwc(params, x, stride=stride, dilation=dilation)
    return jnp.transpose(y, (0, 3, 1, 2))              # NHWC -> NCHW (once)


# ---------------------------------------------------------------------------
# Pure-JAX reference (for correctness check)
# ---------------------------------------------------------------------------
def _ref_bottleneck(params, x_nchw, *, stride=1, dilation=1):
    x = jnp.transpose(x_nchw, (0, 2, 3, 1)).astype(jnp.float32)

    def conv(z, w, pad=0, dil=1, s=1):
        if w.ndim == 2:
            w = w.reshape(1, 1, *w.shape)
        return lax.conv_general_dilated(
            z, w.astype(jnp.float32), window_strides=(s, s),
            padding=[(pad, pad), (pad, pad)], rhs_dilation=(dil, dil),
            dimension_numbers=("NHWC", "HWIO", "NHWC"),
            precision=lax.Precision.HIGHEST)

    def bn(z, sc, sh):
        return z * sc + sh

    o = jnp.maximum(bn(conv(x, params["w1"], s=stride),
                       params["s1"], params["b1"]), 0.0)
    o = jnp.maximum(bn(conv(o, params["w2"], pad=dilation, dil=dilation),
                       params["s2"], params["b2"]), 0.0)
    o = bn(conv(o, params["w3"]), params["s3"], params["b3"])
    if "w_ds" in params:
        r = bn(conv(x, params["w_ds"], s=stride), params["s_ds"], params["b_ds"])
    else:
        r = x
    o = jnp.maximum(o + r, 0.0)
    return jnp.transpose(o, (0, 3, 1, 2))


# ---------------------------------------------------------------------------
if __name__ == "__main__":
    key = jax.random.PRNGKey(0)
    kp1, kp2, kx1, kx2 = jax.random.split(key, 4)

    batch, spatial = 2, 16

    # Case A: identity residual (downsample=None => inplanes == planes*4).
    inplanes_a, planes_a = 32, 8
    params_a = init_bottleneck_params(kp1, inplanes=inplanes_a, planes=planes_a)
    xa = jax.random.normal(kx1, (batch, inplanes_a, spatial, spatial),
                           jnp.float32)
    out_a = jax.block_until_ready(bottleneck_forward(params_a, xa))
    assert out_a.shape == (batch, planes_a * 4, spatial, spatial), out_a.shape
    ref_a = _ref_bottleneck(params_a, xa)
    assert jnp.allclose(out_a, ref_a, rtol=2e-3, atol=2e-3), (
        float(jnp.max(jnp.abs(out_a - ref_a))))

    # Case B: stride=2, dilation=2, downsample branch.
    inplanes_b, planes_b = 16, 8
    params_b = init_bottleneck_params(kp2, inplanes=inplanes_b, planes=planes_b,
                                      downsample=True)
    xb = jax.random.normal(kx2, (batch, inplanes_b, spatial, spatial),
                           jnp.float32)
    out_b = jax.block_until_ready(
        bottleneck_forward(params_b, xb, stride=2, dilation=2))
    assert out_b.shape == (batch, planes_b * 4, spatial // 2, spatial // 2), (
        out_b.shape)
    ref_b = _ref_bottleneck(params_b, xb, stride=2, dilation=2)
    assert jnp.allclose(out_b, ref_b, rtol=2e-3, atol=2e-3), (
        float(jnp.max(jnp.abs(out_b - ref_b))))

    # Case C: bf16 activations/weights with f32 MXU accumulation (perf path).
    params_bf = {k: (v.astype(jnp.bfloat16) if k.startswith("w") else v)
                 for k, v in params_a.items()}
    out_bf = jax.block_until_ready(
        bottleneck_forward(params_bf, xa.astype(jnp.bfloat16)))
    assert out_bf.dtype == jnp.bfloat16
    assert jnp.allclose(out_bf.astype(jnp.float32), ref_a,
                        rtol=5e-2, atol=5e-2), (
        float(jnp.max(jnp.abs(out_bf.astype(jnp.float32) - ref_a))))

    print("KERNEL_OK")
</pallas_src>

<mosaic_0001>
module attributes {stable_mosaic.version = 11 : i64} {
  func.func @kernel(%arg0: i32, %arg1: i32, %arg2: i32, %arg3: memref<1x256x32xf32, #tpu.memory_space<vmem>>, %arg4: memref<32x128xf32, #tpu.memory_space<vmem>>, %arg5: memref<1x128xf32, #tpu.memory_space<vmem>>, %arg6: memref<1x128xf32, #tpu.memory_space<vmem>>, %arg7: memref<1x256x128xf32, #tpu.memory_space<vmem>>) attributes {dimension_semantics = [#tpu.dimension_semantics<parallel>, #tpu.dimension_semantics<parallel>, #tpu.dimension_semantics<arbitrary>], iteration_bounds = array<i64: 2, 1, 1>, scalar_prefetch = 0 : i64, scratch_operands = 0 : i64, tpu.core_type = #tpu.core_type<tc>, window_params = [{transform_indices = @transform_0, window_bounds = array<i64: 1, 256, 32>}, {transform_indices = @transform_1, window_bounds = array<i64: 32, 128>}, {transform_indices = @transform_2, window_bounds = array<i64: 1, 128>}, {transform_indices = @transform_3, window_bounds = array<i64: 1, 128>}, {transform_indices = @transform_4, window_bounds = array<i64: 1, 256, 128>}]} {
    %c0 = arith.constant 0 : index
    %c0_0 = arith.constant 0 : index
    %c0_1 = arith.constant 0 : index
    %0 = vector.load %arg3[%c0, %c0_0, %c0_1] : memref<1x256x32xf32, #tpu.memory_space<vmem>>, vector<1x256x32xf32>
    %1 = vector.shape_cast %0 : vector<1x256x32xf32> to vector<256x32xf32>
    %c0_2 = arith.constant 0 : index
    %c0_3 = arith.constant 0 : index
    %2 = vector.load %arg4[%c0_2, %c0_3] : memref<32x128xf32, #tpu.memory_space<vmem>>, vector<32x128xf32>
    %cst = arith.constant dense<0.000000e+00> : vector<256x128xf32>
    %3 = tpu.matmul %1, %2, %cst {dimension_numbers = #tpu.dot_dimension_numbers<[1], [0], [0], [1], [0, 0, 1, 1], [], []>} : vector<256x32xf32>, vector<32x128xf32>, vector<256x128xf32> -> vector<256x128xf32>
    %c0_4 = arith.constant 0 : index
    %c0_5 = arith.constant 0 : index
    %4 = vector.load %arg5[%c0_4, %c0_5] : memref<1x128xf32, #tpu.memory_space<vmem>>, vector<1x128xf32>
    %5 = vector.broadcast %4 : vector<1x128xf32> to vector<256x128xf32>
    %6 = arith.mulf %3, %5 : vector<256x128xf32>
    %c0_6 = arith.constant 0 : index
    %c0_7 = arith.constant 0 : index
    %7 = vector.load %arg6[%c0_6, %c0_7] : memref<1x128xf32, #tpu.memory_space<vmem>>, vector<1x128xf32>
    %8 = vector.broadcast %7 : vector<1x128xf32> to vector<256x128xf32>
    %9 = arith.addf %6, %8 : vector<256x128xf32>
    %cst_8 = arith.constant 0.000000e+00 : f32
    %10 = vector.broadcast %cst_8 : f32 to vector<256x128xf32>
    %11 = arith.maximumf %9, %10 : vector<256x128xf32>
    %c0_9 = arith.constant 0 : index
    %c0_10 = arith.constant 0 : index
    %c0_11 = arith.constant 0 : index
    %12 = vector.load %arg7[%c0_9, %c0_10, %c0_11] : memref<1x256x128xf32, #tpu.memory_space<vmem>>, vector<1x256x128xf32>
    %13 = vector.shape_cast %12 : vector<1x256x128xf32> to vector<256x128xf32>
    %14 = vector.shape_cast %11 : vector<256x128xf32> to vector<1x256x128xf32>
    tpu.vector_store %arg7[%c0_9, %c0_10, %c0_11], %14 {strides = array<i32>} : memref<1x256x128xf32, #tpu.memory_space<vmem>>, vector<1x256x128xf32>,
    return
  }
  func.func @transform_0(%arg0: i32, %arg1: i32, %arg2: i32) -> (i32, i32, i32) {
    %c0_i32 = arith.constant 0 : i32
    %c0_i32_0 = arith.constant 0 : i32
    return %arg0, %arg1, %c0_i32 : i32, i32, i32
  }
  func.func @transform_1(%arg0: i32, %arg1: i32, %arg2: i32) -> (i32, i32) {
    %c0_i32 = arith.constant 0 : i32
    %c0_i32_0 = arith.constant 0 : i32
    return %c0_i32, %arg2 : i32, i32
  }
  func.func @transform_2(%arg0: i32, %arg1: i32, %arg2: i32) -> (i32, i32) {
    %c0_i32 = arith.constant 0 : i32
    %c0_i32_0 = arith.constant 0 : i32
    return %c0_i32, %arg2 : i32, i32
  }
  func.func @transform_3(%arg0: i32, %arg1: i32, %arg2: i32) -> (i32, i32) {
    %c0_i32 = arith.constant 0 : i32
    %c0_i32_0 = arith.constant 0 : i32
    return %c0_i32, %arg2 : i32, i32
  }
  func.func @transform_4(%arg0: i32, %arg1: i32, %arg2: i32) -> (i32, i32, i32) {
    %c0_i32 = arith.constant 0 : i32
    return %arg0, %arg1, %arg2 : i32, i32, i32
  }
}

</mosaic_0001>

<llo_original>
// kernel: tpu_custom_call.1
$region0: #{tpu_custom_call.1}
  #allocation0 [shape = 'u32[]', space=smem, size = 0x4, offset = 0x4, fixed_abs, tag = 'smem constant byte address 0x4 - core index']
  #allocation1 [shape = 'u32[144,128]{1,0:T(1,128)}', space=vmem, size = 0x12000, scoped, tag = 'internal scratch']
  %s0 = inlined_call_operand.vmem [shape: f32[2,256,32], index: 0, kind: input, shape index: {}]
  %s1 = inlined_call_operand.vmem [shape: f32[32,128], index: 1, kind: input, shape index: {}]
  %s2 = inlined_call_operand.vmem [shape: f32[1,128], index: 2, kind: input, shape index: {}]
  %s3 = inlined_call_operand.vmem [shape: f32[1,128], index: 3, kind: input, shape index: {}]
  %s4 = inlined_call_operand.hbm [shape: f32[2,256,128], index: 4, kind: output, shape index: {}]
  %s5 = sld [smem:[#allocation0]]
  $region49: #{tpu_custom_call.1} parent=0
    _
  %s7 = ssub.s32 1, %s5
  %s8 = scalar_select 0, %s7, %s5
  $region1: #{tpu_custom_call.1} parent=0
    #allocation2 [shape = 'u8[262144]{0}', space=vmem, size = 0x40000, scoped, tag = 'output window, operand 0']
    #allocation3 [shape = 's32[2]{0}', space=sflag, size = 0x8, scoped, tag = 'scoped memory for tpu_custom_call.1']
    %9 = vsyncpa [#allocation3], 0
    %s10 = scalar_lea.sflag [#allocation3], 1
    %11 = vsyncpa %s10, 0
    loop: start=0, step=1, limit=4
    $region2: #{tpu_custom_call.1} parent=1 // loop_pre_header
      _
    $region3: #{tpu_custom_call.1} parent=1 // loop_header
      %s13 = sphi 0, %s17
      %p14 = scmp.ge.s32.totalorder %s13, 4
      %s20 = sphi 0, %s39
      %s21 = sphi 0, %s35
      %s22 = sphi 0, %s31
      %s23 = sphi 0, %s20
      %s24 = sphi 0, %s21
      %s25 = sphi 0, %s22
      %s26 = sphi 0, %s23
      %s27 = sphi 0, %s24
      %s28 = sphi 0, %s25
      %s44 = sphi 0, %s46
      %s47 = sphi 0, %s44
      %s48 = sphi 0, %s47
      %s64 = sphi 0, %s48
      %s70 = sphi 0, %s72
      %s73 = sphi 0, %s70
      %s74 = sphi 0, %s73
      %s90 = sphi 0, %s74
      %s96 = sphi 0, %s98
      %s99 = sphi 0, %s96
      %s100 = sphi 0, %s99
      %s116 = sphi 0, %s100
      %s122 = sphi 0, %s124
      %s125 = sphi 0, %s122
      %s126 = sphi 0, %s125
      %s142 = sphi 0, %s126
      %s152 = sphi 0, %s154
      %s155 = sphi 0, %s152
      %s156 = sphi 0, %s155
      %s172 = sphi 0, %s156
    $region4: #{tpu_custom_call.1} parent=1 // loop_header_branch
      %16 = sbr.rel (%p14) target = $region8
    $region5: #{tpu_custom_call.1} parent=1 // loop_body
      %s18 = ssub.s32 %s13, 1
      %s19 = ssub.s32 %s13, 2
      %s29 = sadd.s32 1, %s22
      %p30 = scmp.ge.s32.totalorder %s29, 1
      %s31 = scalar_select %p30, 0, %s29
      %s32 = sadd.s32 1, %s21
      %s33 = scalar_select %p30, %s32, %s21
      %p34 = scmp.ge.s32.totalorder %s33, 1
      %s35 = scalar_select %p34, 0, %s33
      %s36 = sadd.s32 1, %s20
      %s37 = scalar_select %p34, %s36, %s20
      %p38 = scmp.ge.s32.totalorder %s37, 2
      %s39 = scalar_select %p38, 0, %s37
      %s40 = ssub.s32 %s20, %s39
      %s41 = ssub.s32 %s21, %s35
      %s42 = sor.u32 %s40, %s41
      %p43 = scmp.eq.s32.totalorder %s42, 0
      %s45 = sadd.s32 %s44, 1
      %s46 = scalar_select %p43, %s44, %s45
      %p49 = pneg %p43
      %p50 = scmp.eq.s32.totalorder %s13, 1
      %p51 = por %p49, %p50
      %p52 = scmp.ne.s32.totalorder %s44, %s47
      %p53 = scmp.eq.s32.totalorder %s13, 0
      %p54 = por %p52, %p53
      %p55 = scmp.ne.s32.totalorder %s44, %s47
      %p56 = scmp.eq.s32.totalorder %s18, 1
      %p57 = por %p55, %p56
      %p58 = scmp.ne.s32.totalorder %s47, %s48
      %p59 = scmp.eq.s32.totalorder %s18, 0
      %p60 = por %p58, %p59
      %p61 = scmp.ne.s32.totalorder %s47, %s48
      %p62 = scmp.eq.s32.totalorder %s19, 1
      %p63 = por %p61, %p62
      %p65 = scmp.ne.s32.totalorder %s48, %s64
      %p66 = scmp.eq.s32.totalorder %s19, 0
      %p67 = por %p65, %p66
      %s68 = ssub.s32 %s22, %s31
      %p69 = scmp.eq.s32.totalorder %s68, 0
      %s71 = sadd.s32 %s70, 1
      %s72 = scalar_select %p69, %s70, %s71
      %p75 = pneg %p69
      %p76 = scmp.eq.s32.totalorder %s13, 1
      %p77 = por %p75, %p76
      %p78 = scmp.ne.s32.totalorder %s70, %s73
      %p79 = scmp.eq.s32.totalorder %s13, 0
      %p80 = por %p78, %p79
      %p81 = scmp.ne.s32.totalorder %s70, %s73
      %p82 = scmp.eq.s32.totalorder %s18, 1
      %p83 = por %p81, %p82
      %p84 = scmp.ne.s32.totalorder %s73, %s74
      %p85 = scmp.eq.s32.totalorder %s18, 0
      %p86 = por %p84, %p85
      %p87 = scmp.ne.s32.totalorder %s73, %s74
      %p88 = scmp.eq.s32.totalorder %s19, 1
      %p89 = por %p87, %p88
      %p91 = scmp.ne.s32.totalorder %s74, %s90
      %p92 = scmp.eq.s32.totalorder %s19, 0
      %p93 = por %p91, %p92
      %s94 = ssub.s32 %s22, %s31
      %p95 = scmp.eq.s32.totalorder %s94, 0
      %s97 = sadd.s32 %s96, 1
      %s98 = scalar_select %p95, %s96, %s97
      %p101 = pneg %p95
      %p102 = scmp.eq.s32.totalorder %s13, 1
      %p103 = por %p101, %p102
      %p104 = scmp.ne.s32.totalorder %s96, %s99
      %p105 = scmp.eq.s32.totalorder %s13, 0
      %p106 = por %p104, %p105
      %p107 = scmp.ne.s32.totalorder %s96, %s99
      %p108 = scmp.eq.s32.totalorder %s18, 1
      %p109 = por %p107, %p108
      %p110 = scmp.ne.s32.totalorder %s99, %s100
      %p111 = scmp.eq.s32.totalorder %s18, 0
      %p112 = por %p110, %p111
      %p113 = scmp.ne.s32.totalorder %s99, %s100
      %p114 = scmp.eq.s32.totalorder %s19, 1
      %p115 = por %p113, %p114
      %p117 = scmp.ne.s32.totalorder %s100, %s116
      %p118 = scmp.eq.s32.totalorder %s19, 0
      %p119 = por %p117, %p118
      %s120 = ssub.s32 %s22, %s31
      %p121 = scmp.eq.s32.totalorder %s120, 0
      %s123 = sadd.s32 %s122, 1
      %s124 = scalar_select %p121, %s122, %s123
      %p127 = pneg %p121
      %p128 = scmp.eq.s32.totalorder %s13, 1
      %p129 = por %p127, %p128
      %p130 = scmp.ne.s32.totalorder %s122, %s125
      %p131 = scmp.eq.s32.totalorder %s13, 0
      %p132 = por %p130, %p131
      %p133 = scmp.ne.s32.totalorder %s122, %s125
      %p134 = scmp.eq.s32.totalorder %s18, 1
      %p135 = por %p133, %p134
      %p136 = scmp.ne.s32.totalorder %s125, %s126
      %p137 = scmp.eq.s32.totalorder %s18, 0
      %p138 = por %p136, %p137
      %p139 = scmp.ne.s32.totalorder %s125, %s126
      %p140 = scmp.eq.s32.totalorder %s19, 1
      %p141 = por %p139, %p140
      %p143 = scmp.ne.s32.totalorder %s126, %s142
      %p144 = scmp.eq.s32.totalorder %s19, 0
      %p145 = por %p143, %p144
      %s146 = ssub.s32 %s20, %s39
      %s147 = ssub.s32 %s21, %s35
      %s148 = sor.u32 %s146, %s147
      %s149 = ssub.s32 %s22, %s31
      %s150 = sor.u32 %s148, %s149
      %p151 = scmp.eq.s32.totalorder %s150, 0
      %s153 = sadd.s32 %s152, 1
      %s154 = scalar_select %p151, %s152, %s153
      %p157 = pneg %p151
      %p158 = scmp.eq.s32.totalorder %s13, 1
      %p159 = por %p157, %p158
      %p160 = scmp.ne.s32.totalorder %s152, %s155
      %p161 = scmp.eq.s32.totalorder %s13, 0
      %p162 = por %p160, %p161
      %p163 = scmp.ne.s32.totalorder %s152, %s155
      %p164 = scmp.eq.s32.totalorder %s18, 1
      %p165 = por %p163, %p164
      %p166 = scmp.ne.s32.totalorder %s155, %s156
      %p167 = scmp.eq.s32.totalorder %s18, 0
      %p168 = por %p166, %p167
      %p169 = scmp.ne.s32.totalorder %s155, %s156
      %p170 = scmp.eq.s32.totalorder %s19, 1
      %p171 = por %p169, %p170
      %p173 = scmp.ne.s32.totalorder %s156, %s172
      %p174 = scmp.eq.s32.totalorder %s19, 0
      %p175 = por %p173, %p174
      %p176 = scmp.le.s32.totalorder 1, %s13
      %p177 = scmp.lt.s32.totalorder %s13, 3
      %p178 = pnand %p176, %p177
      %p179 = pneg %p178
      // Predicated region
      $region9: #{tpu_custom_call.1} parent=5 // pred_check
        _
      $region10: #{tpu_custom_call.1} parent=5 // pred_check_branch
        %181 = sbr.rel (%p178) target = $region12
      $region11: #{tpu_custom_call.1} parent=5 // pred_region
        %s182 = ssub.s32 %s13, 1
        // Predicated region
        $region13: #{tpu_custom_call.1} parent=11 // pred_check
          %p183 = pneg %p86
        $region14: #{tpu_custom_call.1} parent=11 // pred_check_branch
          %185 = sbr.rel (%p183) target = $region16
        $region15: #{tpu_custom_call.1} parent=11 // pred_region
          %p186 = scmp.lt.s32.totalorder %s25, 0
          %s187 = scalar_select %p186, %s25, 0
          %s188 = smul.addr %s187, 8
          %s189 = scalar_lea.vmem %s1, %s188
        $region16: #{tpu_custom_call.1} parent=11 // pred_fallthru
          _
        // Predicated region
        $region17: #{tpu_custom_call.1} parent=11 // pred_check
          %p190 = pneg %p112
        $region18: #{tpu_custom_call.1} parent=11 // pred_check_branch
          %192 = sbr.rel (%p190) target = $region20
        $region19: #{tpu_custom_call.1} parent=11 // pred_region
          %p193 = scmp.lt.s32.totalorder %s25, 0
          %s194 = scalar_select %p193, %s25, 0
          %s195 = scalar_lea.vmem %s2, %s194
        $region20: #{tpu_custom_call.1} parent=11 // pred_fallthru
          _
        // Predicated region
        $region21: #{tpu_custom_call.1} parent=11 // pred_check
          %p196 = pneg %p138
        $region22: #{tpu_custom_call.1} parent=11 // pred_check_branch
          %198 = sbr.rel (%p196) target = $region24
        $region23: #{tpu_custom_call.1} parent=11 // pred_region
          %p199 = scmp.lt.s32.totalorder %s25, 0
          %s200 = scalar_select %p199, %s25, 0
          %s201 = scalar_lea.vmem %s3, %s200
        $region24: #{tpu_custom_call.1} parent=11 // pred_fallthru
          _
      $region12: #{tpu_custom_call.1} parent=5 // pred_fallthru
        _
      %p202 = scmp.lt.s32.totalorder %s13, 2
      // Predicated region
      $region25: #{tpu_custom_call.1} parent=5 // pred_check
        %p203 = pneg %p202
      $region26: #{tpu_custom_call.1} parent=5 // pred_check_branch
        %205 = sbr.rel (%p203) target = $region28
      $region27: #{tpu_custom_call.1} parent=5 // pred_region
        // Predicated region
        $region29: #{tpu_custom_call.1} parent=27 // pred_check
          %p206 = pneg %p54
        $region30: #{tpu_custom_call.1} parent=27 // pred_check_branch
          %208 = sbr.rel (%p206) target = $region32
        $region31: #{tpu_custom_call.1} parent=27 // pred_region
          %s209 = smul.u32 32, %s21
          %p210 = scmp.lt.s32.totalorder %s20, 1
          %s211 = scalar_select %p210, %s20, 1
          %p212 = scmp.lt.s32.totalorder %s209, 31
          %s213 = scalar_select %p212, %s209, 31
          %s214 = smul.addr %s211, 32
          %s215 = sadd.s32 %s213, %s214
          %s216 = smul.addr %s215, 8
          %s217 = scalar_lea.vmem %s0, %s216
          %s218 = smul.u32 32, %s21
        $region32: #{tpu_custom_call.1} parent=27 // pred_fallthru
          _
      $region28: #{tpu_custom_call.1} parent=5 // pred_fallthru
        _
      %p219 = scmp.le.s32.totalorder 1, %s13
      %p220 = scmp.lt.s32.totalorder %s13, 3
      %p221 = pnand %p219, %p220
      %p222 = pneg %p221
      // Predicated region
      $region33: #{tpu_custom_call.1} parent=5 // pred_check
        _
      $region34: #{tpu_custom_call.1} parent=5 // pred_check_branch
        %224 = sbr.rel (%p221) target = $region36
      $region35: #{tpu_custom_call.1} parent=5 // pred_region
        %s225 = ssub.s32 %s13, 1
        %s226 = smul.u32 32, %s24
        %p227 = scmp.lt.s32.totalorder %s23, 1
        %s228 = scalar_select %p227, %s23, 1
        %p229 = scmp.lt.s32.totalorder %s226, 31
        %s230 = scalar_select %p229, %s226, 31
        %s231 = smul.addr %s228, 32
        %s232 = sadd.s32 %s230, %s231
        %s233 = smul.addr %s232, 8
        %s234 = scalar_lea.vmem %s0, %s233
        %p235 = pneg %p60
        %p236 = pneg %p57
        %p237 = scmp.lt.s32.totalorder %s25, 0
        %s238 = scalar_select %p237, %s25, 0
        %s239 = smul.addr %s238, 8
        %s240 = scalar_lea.vmem %s1, %s239
        %p241 = pneg %p86
        %p242 = pneg %p83
        %p243 = scmp.lt.s32.totalorder %s25, 0
        %s244 = scalar_select %p243, %s25, 0
        %s245 = scalar_lea.vmem %s2, %s244
        %p246 = pneg %p112
        %p247 = pneg %p109
        %p248 = scmp.lt.s32.totalorder %s25, 0
        %s249 = scalar_select %p248, %s25, 0
        %s250 = scalar_lea.vmem %s3, %s249
        %p251 = pneg %p138
        %p252 = pneg %p135
        %p253 = pneg %p168
        %p254 = pneg %p165
        %s255 = sand.u32 %s155, 1
        %s256 = scalar_lea.sflag [#allocation3], %s255
        %s257 = sand.u32 %s155, 1
        %s258 = smul.addr %s257, 256
        %s259 = scalar_lea.vmem [#allocation2], %s258
        %s260 = smul.u32 32, %s24
        %p261 = scmp.lt.s32.totalorder %s23, 1
        %s262 = scalar_select %p261, %s23, 1
        %p263 = scmp.lt.s32.totalorder %s260, 31
        %s264 = scalar_select %p263, %s260, 31
        %s265 = smul.addr %s262, 32
        %s266 = sadd.s32 %s264, %s265
        %s267 = smul.addr %s266, 8
        %s268 = scalar_lea.vmem %s0, %s267
        %s269 = smul.u32 32, %s24
        %p270 = scmp.lt.s32.totalorder %s25, 0
        %s271 = scalar_select %p270, %s25, 0
        %s272 = smul.addr %s271, 8
        %s273 = scalar_lea.vmem %s1, %s272
        %p274 = scmp.lt.s32.totalorder %s25, 0
        %s275 = scalar_select %p274, %s25, 0
        %s276 = scalar_lea.vmem %s2, %s275
        %p277 = scmp.lt.s32.totalorder %s25, 0
        %s278 = scalar_select %p277, %s25, 0
        %s279 = scalar_lea.vmem %s3, %s278
        %s280 = smul.u32 32, %s24
        %v281 = vld [vmem:[%s268] sm:$0xff]
        %v282 = vld [vmem:[%s268 + $0x8] sm:$0xff]
        %v283 = vld [vmem:[%s268 + $0x10] sm:$0xff]
        %v284 = vld [vmem:[%s268 + $0x18] sm:$0xff]
        %v285 = vld [vmem:[%s268 + $0x20] sm:$0xff]
        %v286 = vld [vmem:[%s268 + $0x28] sm:$0xff]
        %v287 = vld [vmem:[%s268 + $0x30] sm:$0xff]
        %v288 = vld [vmem:[%s268 + $0x38] sm:$0xff]
        %v289 = vld [vmem:[%s268 + $0x40] sm:$0xff]
        %v290 = vld [vmem:[%s268 + $0x48] sm:$0xff]
        %v291 = vld [vmem:[%s268 + $0x50] sm:$0xff]
        %v292 = vld [vmem:[%s268 + $0x58] sm:$0xff]
        %v293 = vld [vmem:[%s268 + $0x60] sm:$0xff]
        %v294 = vld [vmem:[%s268 + $0x68] sm:$0xff]
        %v295 = vld [vmem:[%s268 + $0x70] sm:$0xff]
        %v296 = vld [vmem:[%s268 + $0x78] sm:$0xff]
        %v297 = vld [vmem:[%s268 + $0x80] sm:$0xff]
        %v298 = vld [vmem:[%s268 + $0x88] sm:$0xff]
        %v299 = vld [vmem:[%s268 + $0x90] sm:$0xff]
        %v300 = vld [vmem:[%s268 + $0x98] sm:$0xff]
        %v301 = vld [vmem:[%s268 + $0xa0] sm:$0xff]
        %v302 = vld [vmem:[%s268 + $0xa8] sm:$0xff]
        %v303 = vld [vmem:[%s268 + $0xb0] sm:$0xff]
        %v304 = vld [vmem:[%s268 + $0xb8] sm:$0xff]
        %v305 = vld [vmem:[%s268 + $0xc0] sm:$0xff]
        %v306 = vld [vmem:[%s268 + $0xc8] sm:$0xff]
        %v307 = vld [vmem:[%s268 + $0xd0] sm:$0xff]
        %v308 = vld [vmem:[%s268 + $0xd8] sm:$0xff]
        %v309 = vld [vmem:[%s268 + $0xe0] sm:$0xff]
        %v310 = vld [vmem:[%s268 + $0xe8] sm:$0xff]
        %v311 = vld [vmem:[%s268 + $0xf0] sm:$0xff]
        %v312 = vld [vmem:[%s268 + $0xf8] sm:$0xff]
        %v313 = vld [vmem:[%s273] sm:$0xff]
        %v314 = vld [vmem:[%s273 + $0x8] sm:$0xff]
        %v315 = vld [vmem:[%s273 + $0x10] sm:$0xff]
        %v316 = vld [vmem:[%s273 + $0x18] sm:$0xff]
        %vm317 = vcmask 261120
        %v319 = vsel %vm317, %v281, 0
        %v322 = vsel %vm317, %v282, 0
        %v325 = vsel %vm317, %v283, 0
        %v328 = vsel %vm317, %v284, 0
        %v331 = vsel %vm317, %v285, 0
        %v334 = vsel %vm317, %v286, 0
        %v337 = vsel %vm317, %v287, 0
        %v340 = vsel %vm317, %v288, 0
        %v343 = vsel %vm317, %v289, 0
        %v346 = vsel %vm317, %v290, 0
        %v349 = vsel %vm317, %v291, 0
        %v352 = vsel %vm317, %v292, 0
        %v355 = vsel %vm317, %v293, 0
        %v358 = vsel %vm317, %v294, 0
        %v361 = vsel %vm317, %v295, 0
        %v364 = vsel %vm317, %v296, 0
        %v367 = vsel %vm317, %v297, 0
        %v370 = vsel %vm317, %v298, 0
        %v373 = vsel %vm317, %v299, 0
        %v376 = vsel %vm317, %v300, 0
        %v379 = vsel %vm317, %v301, 0
        %v382 = vsel %vm317, %v302, 0
        %v385 = vsel %vm317, %v303, 0
        %v388 = vsel %vm317, %v304, 0
        %v391 = vsel %vm317, %v305, 0
        %v394 = vsel %vm317, %v306, 0
        %v397 = vsel %vm317, %v307, 0
        %v400 = vsel %vm317, %v308, 0
        %v403 = vsel %vm317, %v309, 0
        %v406 = vsel %vm317, %v310, 0
        %v409 = vsel %vm317, %v311, 0
        %v412 = vsel %vm317, %v312, 0
        %414 = vmatprep.subr.mxu0 0.0
        %415 = vmatpush1.msra.mxu0 0.0
        %416 = vmatprep.subr.mxu0 0.0
        %417 = vmatpush1.msra.mxu0 0.0
        %418 = vmatprep.subr.mxu0 0.0
        %419 = vmatpush1.msra.mxu0 0.0
        %420 = vmatprep.subr.mxu0 0.0
        %421 = vmatpush1.msra.mxu0 0.0
        %422 = vmatprep.subr.mxu0 0.0
        %423 = vmatpush1.msra.mxu0 0.0
        %424 = vmatprep.subr.mxu0 0.0
        %425 = vmatpush1.msra.mxu0 0.0
        %426 = vmatprep.subr.mxu0 0.0
        %427 = vmatpush1.msra.mxu0 0.0
        %428 = vmatprep.subr.mxu0 0.0
        %429 = vmatpush1.msra.mxu0 0.0
        %430 = vmatprep.subr.mxu0 0.0
        %431 = vmatpush1.msra.mxu0 0.0
        %432 = vmatprep.subr.mxu0 0.0
        %433 = vmatpush1.msra.mxu0 0.0
        %434 = vmatprep.subr.mxu0 0.0
        %435 = vmatpush1.msra.mxu0 0.0
        %436 = vmatprep.subr.mxu0 0.0
        %437 = vmatpush1.msra.mxu0 0.0
        %438 = vmatprep.subr.mxu0 0.0
        %439 = vmatpush1.msra.mxu0 %v316
        %440 = vmatprep.subr.mxu0 0.0
        %441 = vmatpush1.msra.mxu0 %v315
        %442 = vmatprep.subr.mxu0 0.0
        %443 = vmatpush1.msra.mxu0 %v314
        %444 = vmatprep.subr.mxu0 0.0
        %445 = vmatpush1.msra.mxu0 %v313
        %446 = vmatprep.subr.mxu0 0.0
        %447 = vmatpush2.msra.mxu0 0.0
        %448 = vmatprep.subr.mxu0 0.0
        %449 = vmatpush2.msra.mxu0 0.0
        %450 = vmatprep.subr.mxu0 0.0
        %451 = vmatpush2.msra.mxu0 0.0
        %452 = vmatprep.subr.mxu0 0.0
        %453 = vmatpush2.msra.mxu0 0.0
        %454 = vmatprep.subr.mxu0 0.0
        %455 = vmatpush2.msra.mxu0 0.0
        %456 = vmatprep.subr.mxu0 0.0
        %457 = vmatpush2.msra.mxu0 0.0
        %458 = vmatprep.subr.mxu0 0.0
        %459 = vmatpush2.msra.mxu0 0.0
        %460 = vmatprep.subr.mxu0 0.0
        %461 = vmatpush2.msra.mxu0 0.0
        %462 = vmatprep.subr.mxu0 0.0
        %463 = vmatpush2.msra.mxu0 0.0
        %464 = vmatprep.subr.mxu0 0.0
        %465 = vmatpush2.msra.mxu0 0.0
        %466 = vmatprep.subr.mxu0 0.0
        %467 = vmatpush2.msra.mxu0 0.0
        %468 = vmatprep.subr.mxu0 0.0
        %469 = vmatpush2.msra.mxu0 0.0
        %470 = vmatprep.subr.mxu0 0.0
        %471 = vmatpush2.msra.mxu0 0.0
        %472 = vmatprep.subr.mxu0 0.0
        %473 = vmatpush2.msra.mxu0 0.0
        %474 = vmatprep.subr.mxu0 0.0
        %475 = vmatpush2.msra.mxu0 0.0
        %476 = vmatprep.subr.mxu0 0.0
        %477 = vmatpush2.msra.mxu0 0.0
        %478 = vmatprep.mubr.f32.mxu0 0.0
        %479 = vmatmul.mubr.f32.gmra.mxu0 %v319
        %v480 = vpop.f32.mrf.mxu0
        %v481 = vadd.f32 0.0, %v480
        %v482 = vpop.f32.mrf.mxu0
        %483 = vmatprep.mubr.f32.mxu0 0.0
        %484 = vmatmul.mubr.f32.gmra.mxu0 %v322
        %v485 = vpop.f32.mrf.mxu0
        %v486 = vadd.f32 0.0, %v485
        %v487 = vpop.f32.mrf.mxu0
        %488 = vmatprep.mubr.f32.mxu0 0.0
        %489 = vmatmul.mubr.f32.gmra.mxu0 %v325
        %v490 = vpop.f32.mrf.mxu0
        %v491 = vadd.f32 0.0, %v490
        %v492 = vpop.f32.mrf.mxu0
        %493 = vmatprep.mubr.f32.mxu0 0.0
        %494 = vmatmul.mubr.f32.gmra.mxu0 %v328
        %v495 = vpop.f32.mrf.mxu0
        %v496 = vadd.f32 0.0, %v495
        %v497 = vpop.f32.mrf.mxu0
        %498 = vmatprep.mubr.f32.mxu0 0.0
        %499 = vmatmul.mubr.f32.gmra.mxu0 %v331
        %v500 = vpop.f32.mrf.mxu0
        %v501 = vadd.f32 0.0, %v500
        %v502 = vpop.f32.mrf.mxu0
        %503 = vmatprep.mubr.f32.mxu0 0.0
        %504 = vmatmul.mubr.f32.gmra.mxu0 %v334
        %v505 = vpop.f32.mrf.mxu0
        %v506 = vadd.f32 0.0, %v505
        %v507 = vpop.f32.mrf.mxu0
        %508 = vmatprep.mubr.f32.mxu0 0.0
        %509 = vmatmul.mubr.f32.gmra.mxu0 %v337
        %v510 = vpop.f32.mrf.mxu0
        %v511 = vadd.f32 0.0, %v510
        %v512 = vpop.f32.mrf.mxu0
        %513 = vmatprep.mubr.f32.mxu0 0.0
        %514 = vmatmul.mubr.f32.gmra.mxu0 %v340
        %v515 = vpop.f32.mrf.mxu0
        %v516 = vadd.f32 0.0, %v515
        %v517 = vpop.f32.mrf.mxu0
        %518 = vmatprep.mubr.f32.mxu0 0.0
        %519 = vmatmul.mubr.f32.gmra.mxu0 %v343
        %v520 = vpop.f32.mrf.mxu0
        %v521 = vadd.f32 0.0, %v520
        %v522 = vpop.f32.mrf.mxu0
        %523 = vmatprep.mubr.f32.mxu0 0.0
        %524 = vmatmul.mubr.f32.gmra.mxu0 %v346
        %v525 = vpop.f32.mrf.mxu0
        %v526 = vadd.f32 0.0, %v525
        %v527 = vpop.f32.mrf.mxu0
        %528 = vmatprep.mubr.f32.mxu0 0.0
        %529 = vmatmul.mubr.f32.gmra.mxu0 %v349
        %v530 = vpop.f32.mrf.mxu0
        %v531 = vadd.f32 0.0, %v530
        %v532 = vpop.f32.mrf.mxu0
        %533 = vmatprep.mubr.f32.mxu0 0.0
        %534 = vmatmul.mubr.f32.gmra.mxu0 %v352
        %v535 = vpop.f32.mrf.mxu0
        %v536 = vadd.f32 0.0, %v535
        %v537 = vpop.f32.mrf.mxu0
        %538 = vmatprep.mubr.f32.mxu0 0.0
        %539 = vmatmul.mubr.f32.gmra.mxu0 %v355
        %v540 = vpop.f32.mrf.mxu0
        %v541 = vadd.f32 0.0, %v540
        %v542 = vpop.f32.mrf.mxu0
        %543 = vmatprep.mubr.f32.mxu0 0.0
        %544 = vmatmul.mubr.f32.gmra.mxu0 %v358
        %v545 = vpop.f32.mrf.mxu0
        %v546 = vadd.f32 0.0, %v545
        %v547 = vpop.f32.mrf.mxu0
        %548 = vmatprep.mubr.f32.mxu0 0.0
        %549 = vmatmul.mubr.f32.gmra.mxu0 %v361
        %v550 = vpop.f32.mrf.mxu0
        %v551 = vadd.f32 0.0, %v550
        %v552 = vpop.f32.mrf.mxu0
        %553 = vmatprep.mubr.f32.mxu0 0.0
        %554 = vmatmul.mubr.f32.gmra.mxu0 %v364
        %v555 = vpop.f32.mrf.mxu0
        %v556 = vadd.f32 0.0, %v555
        %v557 = vpop.f32.mrf.mxu0
        %558 = vmatprep.mubr.f32.mxu0 0.0
        %559 = vmatmul.mubr.f32.gmra.mxu0 %v367
        %v560 = vpop.f32.mrf.mxu0
        %v561 = vadd.f32 0.0, %v560
        %v562 = vpop.f32.mrf.mxu0
        %563 = vmatprep.mubr.f32.mxu0 0.0
        %564 = vmatmul.mubr.f32.gmra.mxu0 %v370
        %v565 = vpop.f32.mrf.mxu0
        %v566 = vadd.f32 0.0, %v565
        %v567 = vpop.f32.mrf.mxu0
        %568 = vmatprep.mubr.f32.mxu0 0.0
        %569 = vmatmul.mubr.f32.gmra.mxu0 %v373
        %v570 = vpop.f32.mrf.mxu0
        %v571 = vadd.f32 0.0, %v570
        %v572 = vpop.f32.mrf.mxu0
        %573 = vmatprep.mubr.f32.mxu0 0.0
        %574 = vmatmul.mubr.f32.gmra.mxu0 %v376
        %v575 = vpop.f32.mrf.mxu0
        %v576 = vadd.f32 0.0, %v575
        %v577 = vpop.f32.mrf.mxu0
        %578 = vmatprep.mubr.f32.mxu0 0.0
        %579 = vmatmul.mubr.f32.gmra.mxu0 %v379
        %v580 = vpop.f32.mrf.mxu0
        %v581 = vadd.f32 0.0, %v580
        %v582 = vpop.f32.mrf.mxu0
        %583 = vmatprep.mubr.f32.mxu0 0.0
        %584 = vmatmul.mubr.f32.gmra.mxu0 %v382
        %v585 = vpop.f32.mrf.mxu0
        %v586 = vadd.f32 0.0, %v585
        %v587 = vpop.f32.mrf.mxu0
        %588 = vmatprep.mubr.f32.mxu0 0.0
        %589 = vmatmul.mubr.f32.gmra.mxu0 %v385
        %v590 = vpop.f32.mrf.mxu0
        %v591 = vadd.f32 0.0, %v590
        %v592 = vpop.f32.mrf.mxu0
        %593 = vmatprep.mubr.f32.mxu0 0.0
        %594 = vmatmul.mubr.f32.gmra.mxu0 %v388
        %v595 = vpop.f32.mrf.mxu0
        %v596 = vadd.f32 0.0, %v595
        %v597 = vpop.f32.mrf.mxu0
        %598 = vmatprep.mubr.f32.mxu0 0.0
        %599 = vmatmul.mubr.f32.gmra.mxu0 %v391
        %v600 = vpop.f32.mrf.mxu0
        %v601 = vadd.f32 0.0, %v600
        %v602 = vpop.f32.mrf.mxu0
        %603 = vmatprep.mubr.f32.mxu0 0.0
        %604 = vmatmul.mubr.f32.gmra.mxu0 %v394
        %v605 = vpop.f32.mrf.mxu0
        %v606 = vadd.f32 0.0, %v605
        %v607 = vpop.f32.mrf.mxu0
        %608 = vmatprep.mubr.f32.mxu0 0.0
        %609 = vmatmul.mubr.f32.gmra.mxu0 %v397
        %v610 = vpop.f32.mrf.mxu0
        %v611 = vadd.f32 0.0, %v610
        %v612 = vpop.f32.mrf.mxu0
        %613 = vmatprep.mubr.f32.mxu0 0.0
        %614 = vmatmul.mubr.f32.gmra.mxu0 %v400
        %v615 = vpop.f32.mrf.mxu0
        %v616 = vadd.f32 0.0, %v615
        %v617 = vpop.f32.mrf.mxu0
        %618 = vmatprep.mubr.f32.mxu0 0.0
        %619 = vmatmul.mubr.f32.gmra.mxu0 %v403
        %v620 = vpop.f32.mrf.mxu0
        %v621 = vadd.f32 0.0, %v620
        %v622 = vpop.f32.mrf.mxu0
        %623 = vmatprep.mubr.f32.mxu0 0.0
        %624 = vmatmul.mubr.f32.gmra.mxu0 %v406
        %v625 = vpop.f32.mrf.mxu0
        %v626 = vadd.f32 0.0, %v625
        %v627 = vpop.f32.mrf.mxu0
        %628 = vmatprep.mubr.f32.mxu0 0.0
        %629 = vmatmul.mubr.f32.gmra.mxu0 %v409
        %v630 = vpop.f32.mrf.mxu0
        %v631 = vadd.f32 0.0, %v630
        %v632 = vpop.f32.mrf.mxu0
        %633 = vmatprep.mubr.f32.mxu0 0.0
        %634 = vmatmul.mubr.f32.gmra.mxu0 %v412
        %v635 = vpop.f32.mrf.mxu0
        %v636 = vadd.f32 0.0, %v635
        %v637 = vpop.f32.mrf.mxu0
        %638 = vdwg.mxu0
        %v639 = vld [vmem:[%s276] sm:$0x1]
        %v641 = vlaneseq
        %v642 = vshrl.u32 %v641, 7
        %v643 = vsub.s32 0, %v642
        %v644 = vrot.slane %v639, %v643
        %v646 = vmul.f32 %v481, %v644
        %v647 = vmul.f32 %v486, %v644
        %v648 = vmul.f32 %v491, %v644
        %v649 = vmul.f32 %v496, %v644
        %v650 = vmul.f32 %v501, %v644
        %v651 = vmul.f32 %v506, %v644
        %v652 = vmul.f32 %v511, %v644
        %v653 = vmul.f32 %v516, %v644
        %v654 = vmul.f32 %v521, %v644
        %v655 = vmul.f32 %v526, %v644
        %v656 = vmul.f32 %v531, %v644
        %v657 = vmul.f32 %v536, %v644
        %v658 = vmul.f32 %v541, %v644
        %v659 = vmul.f32 %v546, %v644
        %v660 = vmul.f32 %v551, %v644
        %v661 = vmul.f32 %v556, %v644
        %v662 = vmul.f32 %v561, %v644
        %v663 = vmul.f32 %v566, %v644
        %v664 = vmul.f32 %v571, %v644
        %v665 = vmul.f32 %v576, %v644
        %v666 = vmul.f32 %v581, %v644
        %v667 = vmul.f32 %v586, %v644
        %v668 = vmul.f32 %v591, %v644
        %v669 = vmul.f32 %v596, %v644
        %v670 = vmul.f32 %v601, %v644
        %v671 = vmul.f32 %v606, %v644
        %v672 = vmul.f32 %v611, %v644
        %v673 = vmul.f32 %v616, %v644
        %v674 = vmul.f32 %v621, %v644
        %v675 = vmul.f32 %v626, %v644
        %v676 = vmul.f32 %v631, %v644
        %v677 = vmul.f32 %v636, %v644
        %v678 = vld [vmem:[%s279] sm:$0x1]
        %v680 = vlaneseq
        %v681 = vshrl.u32 %v680, 7
        %v682 = vsub.s32 0, %v681
        %v683 = vrot.slane %v678, %v682
        %v685 = vadd.f32 %v646, %v683
        %v686 = vadd.f32 %v647, %v683
        %v687 = vadd.f32 %v648, %v683
        %v688 = vadd.f32 %v649, %v683
        %v689 = vadd.f32 %v650, %v683
        %v690 = vadd.f32 %v651, %v683
        %v691 = vadd.f32 %v652, %v683
        %v692 = vadd.f32 %v653, %v683
        %v693 = vadd.f32 %v654, %v683
        %v694 = vadd.f32 %v655, %v683
        %v695 = vadd.f32 %v656, %v683
        %v696 = vadd.f32 %v657, %v683
        %v697 = vadd.f32 %v658, %v683
        %v698 = vadd.f32 %v659, %v683
        %v699 = vadd.f32 %v660, %v683
        %v700 = vadd.f32 %v661, %v683
        %v701 = vadd.f32 %v662, %v683
        %v702 = vadd.f32 %v663, %v683
        %v703 = vadd.f32 %v664, %v683
        %v704 = vadd.f32 %v665, %v683
        %v705 = vadd.f32 %v666, %v683
        %v706 = vadd.f32 %v667, %v683
        %v707 = vadd.f32 %v668, %v683
        %v708 = vadd.f32 %v669, %v683
        %v709 = vadd.f32 %v670, %v683
        %v710 = vadd.f32 %v671, %v683
        %v711 = vadd.f32 %v672, %v683
        %v712 = vadd.f32 %v673, %v683
        %v713 = vadd.f32 %v674, %v683
        %v714 = vadd.f32 %v675, %v683
        %v715 = vadd.f32 %v676, %v683
        %v716 = vadd.f32 %v677, %v683
        %v717 = vmax.f32 %v685, 0.0
        %v718 = vmax.f32 %v686, 0.0
        %v719 = vmax.f32 %v687, 0.0
        %v720 = vmax.f32 %v688, 0.0
        %v721 = vmax.f32 %v689, 0.0
        %v722 = vmax.f32 %v690, 0.0
        %v723 = vmax.f32 %v691, 0.0
        %v724 = vmax.f32 %v692, 0.0
        %v725 = vmax.f32 %v693, 0.0
        %v726 = vmax.f32 %v694, 0.0
        %v727 = vmax.f32 %v695, 0.0
        %v728 = vmax.f32 %v696, 0.0
        %v729 = vmax.f32 %v697, 0.0
        %v730 = vmax.f32 %v698, 0.0
        %v731 = vmax.f32 %v699, 0.0
        %v732 = vmax.f32 %v700, 0.0
        %v733 = vmax.f32 %v701, 0.0
        %v734 = vmax.f32 %v702, 0.0
        %v735 = vmax.f32 %v703, 0.0
        %v736 = vmax.f32 %v704, 0.0
        %v737 = vmax.f32 %v705, 0.0
        %v738 = vmax.f32 %v706, 0.0
        %v739 = vmax.f32 %v707, 0.0
        %v740 = vmax.f32 %v708, 0.0
        %v741 = vmax.f32 %v709, 0.0
        %v742 = vmax.f32 %v710, 0.0
        %v743 = vmax.f32 %v711, 0.0
        %v744 = vmax.f32 %v712, 0.0
        %v745 = vmax.f32 %v713, 0.0
        %v746 = vmax.f32 %v714, 0.0
        %v747 = vmax.f32 %v715, 0.0
        %v748 = vmax.f32 %v716, 0.0
        %749 = vst [vmem:[%s259] sm:$0xff] %v717
        %750 = vst [vmem:[%s259 + $0x8] sm:$0xff] %v718
        %751 = vst [vmem:[%s259 + $0x10] sm:$0xff] %v719
        %752 = vst [vmem:[%s259 + $0x18] sm:$0xff] %v720
        %753 = vst [vmem:[%s259 + $0x20] sm:$0xff] %v721
        %754 = vst [vmem:[%s259 + $0x28] sm:$0xff] %v722
        %755 = vst [vmem:[%s259 + $0x30] sm:$0xff] %v723
        %756 = vst [vmem:[%s259 + $0x38] sm:$0xff] %v724
        %757 = vst [vmem:[%s259 + $0x40] sm:$0xff] %v725
        %758 = vst [vmem:[%s259 + $0x48] sm:$0xff] %v726
        %759 = vst [vmem:[%s259 + $0x50] sm:$0xff] %v727
        %760 = vst [vmem:[%s259 + $0x58] sm:$0xff] %v728
        %761 = vst [vmem:[%s259 + $0x60] sm:$0xff] %v729
        %762 = vst [vmem:[%s259 + $0x68] sm:$0xff] %v730
        %763 = vst [vmem:[%s259 + $0x70] sm:$0xff] %v731
        %764 = vst [vmem:[%s259 + $0x78] sm:$0xff] %v732
        %765 = vst [vmem:[%s259 + $0x80] sm:$0xff] %v733
        %766 = vst [vmem:[%s259 + $0x88] sm:$0xff] %v734
        %767 = vst [vmem:[%s259 + $0x90] sm:$0xff] %v735
        %768 = vst [vmem:[%s259 + $0x98] sm:$0xff] %v736
        %769 = vst [vmem:[%s259 + $0xa0] sm:$0xff] %v737
        %770 = vst [vmem:[%s259 + $0xa8] sm:$0xff] %v738
        %771 = vst [vmem:[%s259 + $0xb0] sm:$0xff] %v739
        %772 = vst [vmem:[%s259 + $0xb8] sm:$0xff] %v740
        %773 = vst [vmem:[%s259 + $0xc0] sm:$0xff] %v741
        %774 = vst [vmem:[%s259 + $0xc8] sm:$0xff] %v742
        %775 = vst [vmem:[%s259 + $0xd0] sm:$0xff] %v743
        %776 = vst [vmem:[%s259 + $0xd8] sm:$0xff] %v744
        %777 = vst [vmem:[%s259 + $0xe0] sm:$0xff] %v745
        %778 = vst [vmem:[%s259 + $0xe8] sm:$0xff] %v746
        %779 = vst [vmem:[%s259 + $0xf0] sm:$0xff] %v747
        %780 = vst [vmem:[%s259 + $0xf8] sm:$0xff] %v748
        %s781 = sand.u32 %s155, 1
        %s782 = scalar_lea.sflag [#allocation3], %s781
        %s783 = sand.u32 %s155, 1
        %s784 = smul.addr %s783, 256
        %s785 = scalar_lea.vmem [#allocation2], %s784
        // Predicated region
        $region37: #{tpu_custom_call.1} parent=35 // pred_check
          %p786 = pneg %p165
        $region38: #{tpu_custom_call.1} parent=35 // pred_check_branch
          %788 = sbr.rel (%p786) target = $region40
        $region39: #{tpu_custom_call.1} parent=35 // pred_region
          %s789 = smul.u32 32, %s24
          %s791 = ssub.s32 4096, 4096
          %792 = vsyncadd %s782, %s791
          %s793 = sadd.s32 %s25, %s789
          %s794 = smul.addr %s23, 32
          %s795 = sadd.s32 %s793, %s794
          %s796 = smul.addr %s795, 128
          %s797 = scalar_lea.hbm %s4, %s796
          %s798 = sshll.u32 %s785, 4
          %s799 = int_to_ptr.vmem [resolvable:$true] %s798
          %804 = dma.vmem_to_hbm [thread:$0]  %s799, 4096, %s797, %s782, 128, 128, 8
        $region40: #{tpu_custom_call.1} parent=35 // pred_fallthru
          _
      $region36: #{tpu_custom_call.1} parent=5 // pred_fallthru
        _
      %p805 = scmp.le.s32.totalorder 2, %s13
      // Predicated region
      $region41: #{tpu_custom_call.1} parent=5 // pred_check
        %p806 = pneg %p805
      $region42: #{tpu_custom_call.1} parent=5 // pred_check_branch
        %808 = sbr.rel (%p806) target = $region44
      $region43: #{tpu_custom_call.1} parent=5 // pred_region
        %s809 = ssub.s32 %s13, 2
        // Predicated region
        $region45: #{tpu_custom_call.1} parent=43 // pred_check
          %p810 = pneg %p171
        $region46: #{tpu_custom_call.1} parent=43 // pred_check_branch
          %812 = sbr.rel (%p810) target = $region48
        $region47: #{tpu_custom_call.1} parent=43 // pred_region
          %s813 = sand.u32 %s156, 1
          %s814 = scalar_lea.sflag [#allocation3], %s813
          %s815 = sand.u32 %s156, 1
          %s816 = smul.addr %s815, 256
          %s817 = scalar_lea.vmem [#allocation2], %s816
          %818 = dma.done %s814, 4096
        $region48: #{tpu_custom_call.1} parent=43 // pred_fallthru
          _
      $region44: #{tpu_custom_call.1} parent=5 // pred_fallthru
        _
    $region6: #{tpu_custom_call.1} parent=1 // loop_footer
      %s17 = sadd.s32 1, %s13
    $region7: #{tpu_custom_call.1} parent=1 // loop_footer_branch
      %12 = sbr.rel target = $region3
    $region8: #{tpu_custom_call.1} parent=1 // loop_exit
      _
    %819 = vsyncpa [#allocation3], 1
    %s820 = scalar_lea.sflag [#allocation3], 1
    %821 = vsyncpa %s820, 1

</llo_original>
